<compile_context>
chip_gen: v6e
topology: v6e:2x2x1
jax: 0.10.0
libtpu: 0.0.40
codegen_flags: <defaults>
</compile_context>

<pallas_src>
import functools

import jax
import jax.numpy as jnp
from jax import lax
from jax.experimental import pallas as pl
from jax.experimental.pallas import tpu as pltpu


def _round_up(x, m):
    return ((x + m - 1) // m) * m


# ---------------------------------------------------------------------------
# Generic row/col-tiled linear kernel: y = x @ w + b (optional ReLU).
# Operands are cast to bf16 for the MXU; accumulation / bias / output are f32.
# Reused for: encoder patch-conv, hoisted U(features), hoisted embedding->gate
# term, and the batched vocabulary projection.
# ---------------------------------------------------------------------------
def _linear_kernel(x_ref, w_ref, b_ref, o_ref, *, relu):
    y = jnp.dot(x_ref[...], w_ref[...],
                preferred_element_type=jnp.float32) + b_ref[...]
    if relu:
        y = jnp.maximum(y, 0.0)
    o_ref[...] = y


def pallas_linear(x, w, b, *, relu=False, tm=512, tn=2048, use_bf16=True):
    rows, k = x.shape
    n = w.shape[1]

    # Rows padded only to a sublane multiple; the row tile is then chosen as a
    # divisor of the padded row count (no pad-to-tile over-padding).
    rows_pad = _round_up(rows, 8)
    if rows_pad != rows:
        x = jnp.pad(x, ((0, rows_pad - rows), (0, 0)))
    tm_eff = min(tm, rows_pad)
    tm_eff -= tm_eff % 8
    while rows_pad % tm_eff:
        tm_eff -= 8

    # Output (N) axis tiling: lane-dense tiles (multiple of 128) so a large
    # vocab weight never sits fully resident in VMEM.
    if n % 128 == 0 and n > tn:
        tn_eff = min(tn, n)
        tn_eff -= tn_eff % 128
        while n % tn_eff:
            tn_eff -= 128
    else:
        tn_eff = n

    xd = x.astype(jnp.bfloat16) if use_bf16 else x
    wd = w.astype(jnp.bfloat16) if use_bf16 else w

    out = pl.pallas_call(
        functools.partial(_linear_kernel, relu=relu),
        grid=(rows_pad // tm_eff, n // tn_eff),
        in_specs=[pl.BlockSpec((tm_eff, k), lambda i, j: (i, 0)),
                  pl.BlockSpec((k, tn_eff), lambda i, j: (0, j)),
                  pl.BlockSpec((1, tn_eff), lambda i, j: (0, j))],
        out_specs=pl.BlockSpec((tm_eff, tn_eff), lambda i, j: (i, j)),
        out_shape=jax.ShapeDtypeStruct((rows_pad, n), jnp.float32),
        compiler_params=pltpu.CompilerParams(
            dimension_semantics=("parallel", "parallel"),
            vmem_limit_bytes=48 * 1024 * 1024),
    )(xd, wd, b)
    return out[:rows] if rows_pad != rows else out


# ---------------------------------------------------------------------------
# Encoder stand-in: strided patch-conv expressed as a row-tiled matmul + ReLU.
# Output layout matches EncoderCNN's permute(0,2,3,1).view(B,-1,C): (B, N, E).
# ---------------------------------------------------------------------------
def encoder_forward(images, conv_w, conv_b, *, patch):
    B, C, H, W = images.shape
    Hp, Wp = H // patch, W // patch
    x = jnp.transpose(images, (0, 2, 3, 1))                     # NHWC
    x = x.reshape(B, Hp, patch, Wp, patch, C)
    x = jnp.transpose(x, (0, 1, 3, 2, 4, 5))                    # (B,Hp,Wp,k,k,C)
    patches = x.reshape(B * Hp * Wp, patch * patch * C)
    enc_dim = conv_w.shape[1]
    feats = pallas_linear(patches, conv_w, conv_b, relu=True)
    return feats.reshape(B, Hp * Wp, enc_dim)                   # (B, N, enc_dim)


# ---------------------------------------------------------------------------
# Recurrent decoder kernel: single grid point; all T caption steps run as an
# unrolled lax.fori_loop with (h, c) as loop carries.  Per-step outputs are
# written with dynamic leading-index stores.  Only the truly recurrent work is
# inside the loop: W(h), tanh/softmax, VPU context reduce, one fused gate
# matmul, LSTM cell epilogue.
# ---------------------------------------------------------------------------
def _decoder_kernel(feat_ref, uhs_ref, sbias_ref, h0_ref, c0_ref, gx_ref,
                    Ww_ref, Wb_ref, Arow_ref, Wfused_ref, bhh_ref,
                    h_out_ref, alpha_out_ref):
    T = gx_ref.shape[0]
    dec = h0_ref.shape[1]

    sbias = sbias_ref[...]                                        # (1, N_pad) f32
    Wb = Wb_ref[...]                                              # (1, att)  f32
    Arow = Arow_ref[...]                                          # (1, att)  f32
    bhh = bhh_ref[...]                                            # (1, 4*dec) f32

    def step(t, carry):
        h, c = carry                                              # (B, dec) f32

        # --- Bahdanau (additive) attention; u_hs hoisted; A as VPU mul+reduce
        w_ah = jnp.dot(h.astype(jnp.bfloat16), Ww_ref[...],
                       preferred_element_type=jnp.float32) + Wb   # (B, att)
        combined = jnp.tanh(uhs_ref[...].astype(jnp.float32)
                            + w_ah[:, None, :])                   # (B, Np, att)
        scores = jnp.sum(combined * Arow[None, :, :], axis=-1) + sbias  # (B, Np)
        scores = scores - jnp.max(scores, axis=1, keepdims=True)
        exps = jnp.exp(scores)
        alpha = exps / jnp.sum(exps, axis=1, keepdims=True)       # exact softmax

        # context: VPU multiply + reduce over N (no M=1 MXU matmuls)
        context = jnp.sum(alpha[:, :, None]
                          * feat_ref[...].astype(jnp.float32), axis=1)  # (B, E)

        # --- LSTM cell (PyTorch gate order i,f,g,o) --------------------------
        # embedding term (+ b_ih) precomputed in gx_ref; context/hidden terms
        # fused into a single K = Enc + dec MXU matmul.
        xh = jnp.concatenate([context, h], axis=-1).astype(jnp.bfloat16)
        gates = (gx_ref[t] + bhh
                 + jnp.dot(xh, Wfused_ref[...],
                           preferred_element_type=jnp.float32))   # (B, 4*dec)
        i_g = jax.nn.sigmoid(gates[:, 0 * dec:1 * dec])
        f_g = jax.nn.sigmoid(gates[:, 1 * dec:2 * dec])
        g_g = jnp.tanh(gates[:, 2 * dec:3 * dec])
        o_g = jax.nn.sigmoid(gates[:, 3 * dec:4 * dec])
        c_new = f_g * c + i_g * g_g
        h_new = o_g * jnp.tanh(c_new)

        h_out_ref[t] = h_new                                      # vocab proj later
        alpha_out_ref[t] = alpha
        return (h_new, c_new)

    lax.fori_loop(0, T, step, (h0_ref[...], c0_ref[...]), unroll=True)


def decoder_forward(features, captions, params):
    B, N, Enc = features.shape
    T = captions.shape[1] - 1                    # seq_length = len(captions[0]) - 1
    embed_tbl = params["embedding"]
    embed_dim = embed_tbl.shape[1]
    att = params["U_w"].shape[1]
    dec = params["init_h_w"].shape[1]
    vocab = params["fcn_w"].shape[1]

    # --- lane-dense padding of the feature axis (alphas' last dim) ----------
    N_pad = _round_up(N, 128)
    feats_pad = jnp.pad(features, ((0, 0), (0, N_pad - N), (0, 0)))
    score_bias = jnp.where(jnp.arange(N_pad) < N, 0.0, -1e30
                           ).astype(jnp.float32)[None, :]

    # --- hoisted, time-invariant / batchable matmuls -------------------------
    # U(features): identical for every step -> compute once; bf16-resident.
    u_hs = pallas_linear(feats_pad.reshape(B * N_pad, Enc),
                         params["U_w"], params["U_b"]).reshape(B, N_pad, att)
    u_hs_bf16 = u_hs.astype(jnp.bfloat16)
    feats_bf16 = feats_pad.astype(jnp.bfloat16)

    # Embedding contribution to the LSTM gates for all T steps at once
    # (includes b_ih); only the fused context/hidden term stays in the loop.
    embeds = jnp.take(embed_tbl, captions[:, :T], axis=0)         # (B, T, embed)
    embeds_t = jnp.transpose(embeds, (1, 0, 2))                   # (T, B, embed)
    Wih = params["lstm_wih"]
    gates_x = pallas_linear(embeds_t.reshape(T * B, embed_dim),
                            Wih[:embed_dim, :],
                            params["lstm_bih"]).reshape(T, B, 4 * dec)

    # Fused context+hidden gate weight: one K = Enc + dec matmul per step.
    W_fused = jnp.concatenate([Wih[embed_dim:, :], params["lstm_whh"]],
                              axis=0).astype(jnp.bfloat16)        # (Enc+dec, 4*dec)

    # init_hidden_state(features): mean over the UNPADDED features + merged
    # h/c projection (M = B -> plain XLA matmul beats a kernel launch).
    mean_feat = jnp.mean(features, axis=1)                        # (B, Enc)
    hc_w = jnp.concatenate([params["init_h_w"], params["init_c_w"]], axis=1)
    hc_b = jnp.concatenate([params["init_h_b"], params["init_c_b"]], axis=1)
    hc0 = jnp.dot(mean_feat, hc_w) + hc_b
    h0, c0 = hc0[:, :dec], hc0[:, dec:]

    A_row = params["A_w"].reshape(1, att)                         # (att,1)->(1,att)
    # NOTE: A_b (bias of the att->1 scoring Linear) adds the same scalar to
    # every score; softmax is shift-invariant, so it is dropped here (alphas
    # are mathematically identical to the PyTorch reference).
    Ww_bf16 = params["W_w"].astype(jnp.bfloat16)

    def full(shape):
        nd = len(shape)
        return pl.BlockSpec(shape, lambda i, _nd=nd: (0,) * _nd)

    in_specs = [
        full((B, N_pad, Enc)),                                    # features (bf16)
        full((B, N_pad, att)),                                    # u_hs (bf16)
        full((1, N_pad)),                                         # score bias
        full((B, dec)), full((B, dec)),                           # h0, c0
        full((T, B, 4 * dec)),                                    # gates_x (all T)
        full((dec, att)), full((1, att)),                         # W_w (bf16), W_b
        full((1, att)),                                           # A row
        full((Enc + dec, 4 * dec)),                               # fused gate W (bf16)
        full((1, 4 * dec)),                                       # b_hh
    ]
    out_specs = (full((T, B, dec)), full((T, B, N_pad)))

    h_all, alphas_pad = pl.pallas_call(
        _decoder_kernel,
        grid=(1,),
        in_specs=in_specs,
        out_specs=out_specs,
        out_shape=(jax.ShapeDtypeStruct((T, B, dec), jnp.float32),
                   jax.ShapeDtypeStruct((T, B, N_pad), jnp.float32)),
        compiler_params=pltpu.CompilerParams(
            dimension_semantics=("arbitrary",),
            vmem_limit_bytes=48 * 1024 * 1024),
    )(feats_bf16, u_hs_bf16, score_bias, h0, c0, gates_x,
      Ww_bf16, params["W_b"], A_row, W_fused, params["lstm_bhh"])

    # Vocabulary projection batched over all T*B rows (dominant FLOP) — one
    # MXU-saturating, N-tiled matmul instead of T skinny ones inside the loop.
    preds_t = pallas_linear(h_all.reshape(T * B, dec),
                            params["fcn_w"], params["fcn_b"]).reshape(T, B, vocab)

    preds = jnp.transpose(preds_t, (1, 0, 2))                     # (B, T, vocab)
    alphas = jnp.transpose(alphas_pad[:, :, :N], (1, 0, 2))       # (B, T, N)
    return preds, alphas


def encoder_decoder_forward(images, captions, params, *, patch):
    features = encoder_forward(images, params["conv_w"], params["conv_b"],
                               patch=patch)
    return decoder_forward(features, captions, params)


# ---------------------------------------------------------------------------
# Deterministic synthetic parameter initialization.
# Weights for nn.Linear / nn.LSTMCell are stored pre-transposed (fan_in, fan_out)
# so kernels compute x @ W (+ b), matching PyTorch's x @ W^T + b.
# (f_beta exists in DecoderRNN.__init__ but is unused in forward(); omitted.
#  A_b is kept for parity but is a softmax shift-invariance no-op in forward.)
# ---------------------------------------------------------------------------
def init_params(key, *, embed_size, vocab_size, attention_dim, encoder_dim,
                decoder_dim, patch, in_channels):
    ks = jax.random.split(key, 19)

    def lin(k, fan_in, fan_out):
        return jax.random.normal(k, (fan_in, fan_out), jnp.float32) * 0.1

    def bias(k, dim):
        return jax.random.normal(k, (1, dim), jnp.float32) * 0.1

    p = {}
    p["conv_w"] = lin(ks[0], patch * patch * in_channels, encoder_dim)
    p["conv_b"] = bias(ks[1], encoder_dim)
    p["embedding"] = jax.random.normal(ks[2], (vocab_size, embed_size),
                                       jnp.float32) * 0.1
    p["U_w"] = lin(ks[3], encoder_dim, attention_dim)
    p["U_b"] = bias(ks[4], attention_dim)
    p["W_w"] = lin(ks[5], decoder_dim, attention_dim)
    p["W_b"] = bias(ks[6], attention_dim)
    p["A_w"] = lin(ks[7], attention_dim, 1)
    p["A_b"] = bias(ks[8], 1)          # unused in forward (softmax shift no-op)
    p["init_h_w"] = lin(ks[9], encoder_dim, decoder_dim)
    p["init_h_b"] = bias(ks[10], decoder_dim)
    p["init_c_w"] = lin(ks[11], encoder_dim, decoder_dim)
    p["init_c_b"] = bias(ks[12], decoder_dim)
    p["lstm_wih"] = lin(ks[13], embed_size + encoder_dim, 4 * decoder_dim)
    p["lstm_whh"] = lin(ks[14], decoder_dim, 4 * decoder_dim)
    p["lstm_bih"] = bias(ks[15], 4 * decoder_dim)
    p["lstm_bhh"] = bias(ks[16], 4 * decoder_dim)
    p["fcn_w"] = lin(ks[17], decoder_dim, vocab_size)
    p["fcn_b"] = bias(ks[18], vocab_size)
    return p


if __name__ == "__main__":
    key = jax.random.PRNGKey(0)
    pkey, ikey, ckey = jax.random.split(key, 3)

    # small but vreg/MXU-friendly shapes: B multiple of 8 (sublane), dec/att/E
    # multiples of 128 (lane), vocab a multiple of 128 (lane-dense projection).
    B, C, H, W = 8, 3, 16, 16
    patch = 4                                  # -> 4x4 spatial grid, N = 16
    embed_size, vocab_size = 32, 256
    attention_dim, encoder_dim, decoder_dim = 128, 128, 128
    total_caption_len = 9                      # seq_length = 8

    params = init_params(pkey,
                         embed_size=embed_size, vocab_size=vocab_size,
                         attention_dim=attention_dim, encoder_dim=encoder_dim,
                         decoder_dim=decoder_dim, patch=patch, in_channels=C)

    images = jax.random.normal(ikey, (B, C, H, W), jnp.float32)
    captions = jax.random.randint(ckey, (B, total_caption_len), 0, vocab_size,
                                  dtype=jnp.int32)

    preds, alphas = encoder_decoder_forward(images, captions, params, patch=patch)
    jax.block_until_ready((preds, alphas))

    T = total_caption_len - 1
    N = (H // patch) * (W // patch)
    assert preds.shape == (B, T, vocab_size), preds.shape
    assert alphas.shape == (B, T, N), alphas.shape
    assert bool(jnp.all(jnp.isfinite(preds))) and bool(jnp.all(jnp.isfinite(alphas)))
    # exact-softmax alphas: rows sum to 1 (f32 precision)
    assert bool(jnp.allclose(jnp.sum(alphas, axis=-1), 1.0, atol=1e-3))
    print("KERNEL_OK")
</pallas_src>

<mosaic_0001>
module attributes {stable_mosaic.version = 11 : i64} {
  func.func @_linear_kernel(%arg0: i32, %arg1: i32, %arg2: memref<128x48xbf16, #tpu.memory_space<vmem>>, %arg3: memref<48x128xbf16, #tpu.memory_space<vmem>>, %arg4: memref<1x128xf32, #tpu.memory_space<vmem>>, %arg5: memref<128x128xf32, #tpu.memory_space<vmem>>) attributes {dimension_semantics = [#tpu.dimension_semantics<parallel>, #tpu.dimension_semantics<parallel>], iteration_bounds = array<i64: 1, 1>, scalar_prefetch = 0 : i64, scratch_operands = 0 : i64, tpu.core_type = #tpu.core_type<tc>, window_params = [{transform_indices = @transform_0, window_bounds = array<i64: 128, 48>}, {transform_indices = @transform_1, window_bounds = array<i64: 48, 128>}, {transform_indices = @transform_2, window_bounds = array<i64: 1, 128>}, {transform_indices = @transform_3, window_bounds = array<i64: 128, 128>}]} {
    %c0 = arith.constant 0 : index
    %c0_0 = arith.constant 0 : index
    %0 = vector.load %arg2[%c0, %c0_0] : memref<128x48xbf16, #tpu.memory_space<vmem>>, vector<128x48xbf16>
    %c0_1 = arith.constant 0 : index
    %c0_2 = arith.constant 0 : index
    %1 = vector.load %arg3[%c0_1, %c0_2] : memref<48x128xbf16, #tpu.memory_space<vmem>>, vector<48x128xbf16>
    %cst = arith.constant dense<0.000000e+00> : vector<128x128xf32>
    %2 = tpu.matmul %0, %1, %cst {dimension_numbers = #tpu.dot_dimension_numbers<[1], [0], [0], [1], [0, 0, 1, 1], [], []>} : vector<128x48xbf16>, vector<48x128xbf16>, vector<128x128xf32> -> vector<128x128xf32>
    %c0_3 = arith.constant 0 : index
    %c0_4 = arith.constant 0 : index
    %3 = vector.load %arg4[%c0_3, %c0_4] : memref<1x128xf32, #tpu.memory_space<vmem>>, vector<1x128xf32>
    %4 = vector.broadcast %3 : vector<1x128xf32> to vector<128x128xf32>
    %5 = arith.addf %2, %4 : vector<128x128xf32>
    %cst_5 = arith.constant 0.000000e+00 : f32
    %6 = vector.broadcast %cst_5 : f32 to vector<128x128xf32>
    %7 = arith.maximumf %5, %6 : vector<128x128xf32>
    %c0_6 = arith.constant 0 : index
    %c0_7 = arith.constant 0 : index
    %8 = vector.load %arg5[%c0_6, %c0_7] : memref<128x128xf32, #tpu.memory_space<vmem>>, vector<128x128xf32>
    tpu.vector_store %arg5[%c0_6, %c0_7], %7 {strides = array<i32>} : memref<128x128xf32, #tpu.memory_space<vmem>>, vector<128x128xf32>,
    return
  }
  func.func @transform_0(%arg0: i32, %arg1: i32) -> (i32, i32) {
    %c0_i32 = arith.constant 0 : i32
    %c0_i32_0 = arith.constant 0 : i32
    return %arg0, %c0_i32 : i32, i32
  }
  func.func @transform_1(%arg0: i32, %arg1: i32) -> (i32, i32) {
    %c0_i32 = arith.constant 0 : i32
    %c0_i32_0 = arith.constant 0 : i32
    return %c0_i32, %arg1 : i32, i32
  }
  func.func @transform_2(%arg0: i32, %arg1: i32) -> (i32, i32) {
    %c0_i32 = arith.constant 0 : i32
    %c0_i32_0 = arith.constant 0 : i32
    return %c0_i32, %arg1 : i32, i32
  }
  func.func @transform_3(%arg0: i32, %arg1: i32) -> (i32, i32) {
    %c0_i32 = arith.constant 0 : i32
    return %arg0, %arg1 : i32, i32
  }
}

</mosaic_0001>

<llo_original>
// kernel: tpu_custom_call.1
$region0: #{tpu_custom_call.1}
  #allocation0 [shape = 'u32[]', space=smem, size = 0x4, offset = 0x4, fixed_abs, tag = 'smem constant byte address 0x4 - core index']
  #allocation1 [shape = 'u32[144,128]{1,0:T(1,128)}', space=vmem, size = 0x12000, scoped, tag = 'internal scratch']
  %s0 = inlined_call_operand.vmem [shape: bf16[128,48], index: 0, kind: input, shape index: {}]
  %s1 = inlined_call_operand.vmem [shape: bf16[48,128], index: 1, kind: input, shape index: {}]
  %s2 = inlined_call_operand.vmem [shape: f32[1,128], index: 2, kind: input, shape index: {}]
  %s3 = inlined_call_operand.hbm [shape: f32[128,128], index: 3, kind: output, shape index: {}]
  %s4 = sld [smem:[#allocation0]]
  $region22: #{tpu_custom_call.1} parent=0
    _
  %s6 = ssub.s32 1, %s4
  %s7 = scalar_select 0, %s6, %s4
  $region1: #{tpu_custom_call.1} parent=0
    #allocation2 [shape = 'u8[65536]{0}', space=vmem, size = 0x10000, scoped, tag = 'output window, operand 0, single buffered']
    #allocation3 [shape = 's32[1]{0}', space=sflag, size = 0x4, scoped, tag = 'scoped memory for tpu_custom_call.1']
    %8 = vsyncpa [#allocation3], 0
    // Predicated region
    $region2: #{tpu_custom_call.1} parent=1 // pred_check
      _
    $region3: #{tpu_custom_call.1} parent=1 // pred_check_branch
      %10 = sbr.rel (0) target = $region5
    $region4: #{tpu_custom_call.1} parent=1 // pred_region
      _
    $region5: #{tpu_custom_call.1} parent=1 // pred_fallthru
      _
    // Predicated region
    $region6: #{tpu_custom_call.1} parent=1 // pred_check
      _
    $region7: #{tpu_custom_call.1} parent=1 // pred_check_branch
      %12 = sbr.rel (0) target = $region9
    $region8: #{tpu_custom_call.1} parent=1 // pred_region
      _
    $region9: #{tpu_custom_call.1} parent=1 // pred_fallthru
      _
    // Predicated region
    $region10: #{tpu_custom_call.1} parent=1 // pred_check
      _
    $region11: #{tpu_custom_call.1} parent=1 // pred_check_branch
      %14 = sbr.rel (0) target = $region13
    $region12: #{tpu_custom_call.1} parent=1 // pred_region
      _
    $region13: #{tpu_custom_call.1} parent=1 // pred_fallthru
      _
    %v16 = vld [vmem:[%s0] sm:$0xf]
    %v17 = vld [vmem:[%s0 + $0x4] sm:$0xf]
    %v18 = vld [vmem:[%s0 + $0x8] sm:$0xf]
    %v19 = vld [vmem:[%s0 + $0xc] sm:$0xf]
    %v20 = vld [vmem:[%s0 + $0x10] sm:$0xf]
    %v21 = vld [vmem:[%s0 + $0x14] sm:$0xf]
    %v22 = vld [vmem:[%s0 + $0x18] sm:$0xf]
    %v23 = vld [vmem:[%s0 + $0x1c] sm:$0xf]
    %v24 = vld [vmem:[%s0 + $0x20] sm:$0xf]
    %v25 = vld [vmem:[%s0 + $0x24] sm:$0xf]
    %v26 = vld [vmem:[%s0 + $0x28] sm:$0xf]
    %v27 = vld [vmem:[%s0 + $0x2c] sm:$0xf]
    %v28 = vld [vmem:[%s0 + $0x30] sm:$0xf]
    %v29 = vld [vmem:[%s0 + $0x34] sm:$0xf]
    %v30 = vld [vmem:[%s0 + $0x38] sm:$0xf]
    %v31 = vld [vmem:[%s0 + $0x3c] sm:$0xf]
    %v32 = vld [vmem:[%s1] sm:$0xf]
    %v33 = vld [vmem:[%s1 + $0x4] sm:$0xf]
    %v34 = vld [vmem:[%s1 + $0x8] sm:$0xf]
    %v35 = vld [vmem:[%s1 + $0xc] sm:$0xf]
    %v36 = vld [vmem:[%s1 + $0x10] sm:$0xf]
    %v37 = vld [vmem:[%s1 + $0x14] sm:$0xf]
    %v38 = vld [vmem:[%s2] sm:$0x1]
    %v40 = vlaneseq
    %v41 = vshrl.u32 %v40, 7
    %v42 = vsub.s32 0, %v41
    %v43 = vrot.slane %v38, %v42
    %v61 = vunpack.c.l.b16 %v16
    %v62 = vunpack.c.l.b16 %v17
    %v63 = vunpack.c.l.b16 %v18
    %v64 = vunpack.c.l.b16 %v19
    %v65 = vunpack.c.l.b16 %v20
    %v66 = vunpack.c.l.b16 %v21
    %v67 = vunpack.c.l.b16 %v22
    %v68 = vunpack.c.l.b16 %v23
    %v69 = vunpack.c.l.b16 %v24
    %v70 = vunpack.c.l.b16 %v25
    %v71 = vunpack.c.l.b16 %v26
    %v72 = vunpack.c.l.b16 %v27
    %v73 = vunpack.c.l.b16 %v28
    %v74 = vunpack.c.l.b16 %v29
    %v75 = vunpack.c.l.b16 %v30
    %v76 = vunpack.c.l.b16 %v31
    %v77 = vpack.c.b16 %v62, %v61
    %v78 = vpack.c.b16 %v64, %v63
    %v79 = vpack.c.b16 %v66, %v65
    %v80 = vpack.c.b16 %v68, %v67
    %v81 = vpack.c.b16 %v70, %v69
    %v82 = vpack.c.b16 %v72, %v71
    %v83 = vpack.c.b16 %v74, %v73
    %v84 = vpack.c.b16 %v76, %v75
    %v91 = vunpack.c.l.b16 %v32
    %v92 = vunpack.c.l.b16 %v33
    %v93 = vunpack.c.l.b16 %v34
    %v94 = vunpack.c.l.b16 %v35
    %v95 = vunpack.c.l.b16 %v36
    %v96 = vunpack.c.l.b16 %v37
    %v97 = vpack.c.b16 %v92, %v91
    %v98 = vpack.c.b16 %v94, %v93
    %v99 = vpack.c.b16 %v96, %v95
    %vm103 = vcmask 392192
    %v105 = vsel %vm103, %v77, 0
    %v108 = vsel %vm103, %v78, 0
    %v111 = vsel %vm103, %v79, 0
    %v114 = vsel %vm103, %v80, 0
    %v117 = vsel %vm103, %v81, 0
    %v120 = vsel %vm103, %v82, 0
    %v123 = vsel %vm103, %v83, 0
    %v126 = vsel %vm103, %v84, 0
    %128 = vmatprep.subr.bf16.mxu0 0
    %129 = vmatpush1.bf16.msra.mxu0 0
    %130 = vmatprep.subr.bf16.mxu0 0
    %131 = vmatpush1.bf16.msra.mxu0 0
    %132 = vmatprep.subr.bf16.mxu0 0
    %133 = vmatpush1.bf16.msra.mxu0 0
    %134 = vmatprep.subr.bf16.mxu0 0
    %135 = vmatpush1.bf16.msra.mxu0 0
    %136 = vmatprep.subr.bf16.mxu0 0
    %137 = vmatpush1.bf16.msra.mxu0 0
    %138 = vmatprep.subr.bf16.mxu0 0
    %139 = vmatpush1.bf16.msra.mxu0 %v99
    %140 = vmatprep.subr.bf16.mxu0 0
    %141 = vmatpush1.bf16.msra.mxu0 %v98
    %142 = vmatprep.subr.bf16.mxu0 0
    %143 = vmatpush1.bf16.msra.mxu0 %v97
    %144 = vmatprep.subr.bf16.mxu0 0
    %145 = vmatpush2.bf16.msra.mxu0 0
    %146 = vmatprep.subr.bf16.mxu0 0
    %147 = vmatpush2.bf16.msra.mxu0 0
    %148 = vmatprep.subr.bf16.mxu0 0
    %149 = vmatpush2.bf16.msra.mxu0 0
    %150 = vmatprep.subr.bf16.mxu0 0
    %151 = vmatpush2.bf16.msra.mxu0 0
    %152 = vmatprep.subr.bf16.mxu0 0
    %153 = vmatpush2.bf16.msra.mxu0 0
    %154 = vmatprep.subr.bf16.mxu0 0
    %155 = vmatpush2.bf16.msra.mxu0 0
    %156 = vmatprep.subr.bf16.mxu0 0
    %157 = vmatpush2.bf16.msra.mxu0 0
    %158 = vmatprep.subr.bf16.mxu0 0
    %159 = vmatpush2.bf16.msra.mxu0 0
    %160 = vmatprep.mubr.bf16.mxu0 0
    %161 = vmatmul.mubr.bf16.gmra.mxu0 %v105
    %v162 = vpop.f32.mrf.mxu0
    %v163 = vadd.f32 %v43, %v162
    %v164 = vpop.f32.mrf.mxu0
    %v165 = vpop.f32.mrf.mxu0
    %v166 = vadd.f32 %v43, %v165
    %v167 = vpop.f32.mrf.mxu0
    %168 = vmatprep.mubr.bf16.mxu0 0
    %169 = vmatmul.mubr.bf16.gmra.mxu0 %v108
    %v170 = vpop.f32.mrf.mxu0
    %v171 = vadd.f32 %v43, %v170
    %v172 = vpop.f32.mrf.mxu0
    %v173 = vpop.f32.mrf.mxu0
    %v174 = vadd.f32 %v43, %v173
    %v175 = vpop.f32.mrf.mxu0
    %176 = vmatprep.mubr.bf16.mxu0 0
    %177 = vmatmul.mubr.bf16.gmra.mxu0 %v111
    %v178 = vpop.f32.mrf.mxu0
    %v179 = vadd.f32 %v43, %v178
    %v180 = vpop.f32.mrf.mxu0
    %v181 = vpop.f32.mrf.mxu0
    %v182 = vadd.f32 %v43, %v181
    %v183 = vpop.f32.mrf.mxu0
    %184 = vmatprep.mubr.bf16.mxu0 0
    %185 = vmatmul.mubr.bf16.gmra.mxu0 %v114
    %v186 = vpop.f32.mrf.mxu0
    %v187 = vadd.f32 %v43, %v186
    %v188 = vpop.f32.mrf.mxu0
    %v189 = vpop.f32.mrf.mxu0
    %v190 = vadd.f32 %v43, %v189
    %v191 = vpop.f32.mrf.mxu0
    %192 = vmatprep.mubr.bf16.mxu0 0
    %193 = vmatmul.mubr.bf16.gmra.mxu0 %v117
    %v194 = vpop.f32.mrf.mxu0
    %v195 = vadd.f32 %v43, %v194
    %v196 = vpop.f32.mrf.mxu0
    %v197 = vpop.f32.mrf.mxu0
    %v198 = vadd.f32 %v43, %v197
    %v199 = vpop.f32.mrf.mxu0
    %200 = vmatprep.mubr.bf16.mxu0 0
    %201 = vmatmul.mubr.bf16.gmra.mxu0 %v120
    %v202 = vpop.f32.mrf.mxu0
    %v203 = vadd.f32 %v43, %v202
    %v204 = vpop.f32.mrf.mxu0
    %v205 = vpop.f32.mrf.mxu0
    %v206 = vadd.f32 %v43, %v205
    %v207 = vpop.f32.mrf.mxu0
    %208 = vmatprep.mubr.bf16.mxu0 0
    %209 = vmatmul.mubr.bf16.gmra.mxu0 %v123
    %v210 = vpop.f32.mrf.mxu0
    %v211 = vadd.f32 %v43, %v210
    %v212 = vpop.f32.mrf.mxu0
    %v213 = vpop.f32.mrf.mxu0
    %v214 = vadd.f32 %v43, %v213
    %v215 = vpop.f32.mrf.mxu0
    %216 = vmatprep.mubr.bf16.mxu0 0
    %217 = vmatmul.mubr.bf16.gmra.mxu0 %v126
    %v218 = vpop.f32.mrf.mxu0
    %v219 = vadd.f32 %v43, %v218
    %v220 = vpop.f32.mrf.mxu0
    %v221 = vpop.f32.mrf.mxu0
    %v222 = vadd.f32 %v43, %v221
    %v223 = vpop.f32.mrf.mxu0
    %224 = vdwg.mxu0
    %v225 = vmax.f32 %v163, 0.0
    %v226 = vmax.f32 %v166, 0.0
    %v227 = vmax.f32 %v171, 0.0
    %v228 = vmax.f32 %v174, 0.0
    %v229 = vmax.f32 %v179, 0.0
    %v230 = vmax.f32 %v182, 0.0
    %v231 = vmax.f32 %v187, 0.0
    %v232 = vmax.f32 %v190, 0.0
    %v233 = vmax.f32 %v195, 0.0
    %v234 = vmax.f32 %v198, 0.0
    %v235 = vmax.f32 %v203, 0.0
    %v236 = vmax.f32 %v206, 0.0
    %v237 = vmax.f32 %v211, 0.0
    %v238 = vmax.f32 %v214, 0.0
    %v239 = vmax.f32 %v219, 0.0
    %v240 = vmax.f32 %v222, 0.0
    %241 = vst [vmem:[#allocation2] sm:$0xff] %v225
    %242 = vst [vmem:[#allocation2 + $0x8] sm:$0xff] %v226
    %243 = vst [vmem:[#allocation2 + $0x10] sm:$0xff] %v227
    %244 = vst [vmem:[#allocation2 + $0x18] sm:$0xff] %v228
    %245 = vst [vmem:[#allocation2 + $0x20] sm:$0xff] %v229
    %246 = vst [vmem:[#allocation2 + $0x28] sm:$0xff] %v230
    %247 = vst [vmem:[#allocation2 + $0x30] sm:$0xff] %v231
    %248 = vst [vmem:[#allocation2 + $0x38] sm:$0xff] %v232
    %249 = vst [vmem:[#allocation2 + $0x40] sm:$0xff] %v233
    %250 = vst [vmem:[#allocation2 + $0x48] sm:$0xff] %v234
    %251 = vst [vmem:[#allocation2 + $0x50] sm:$0xff] %v235
    %252 = vst [vmem:[#allocation2 + $0x58] sm:$0xff] %v236
    %253 = vst [vmem:[#allocation2 + $0x60] sm:$0xff] %v237
    %254 = vst [vmem:[#allocation2 + $0x68] sm:$0xff] %v238
    %255 = vst [vmem:[#allocation2 + $0x70] sm:$0xff] %v239
    %256 = vst [vmem:[#allocation2 + $0x78] sm:$0xff] %v240
    // Predicated region
    $region14: #{tpu_custom_call.1} parent=1 // pred_check
      _
    $region15: #{tpu_custom_call.1} parent=1 // pred_check_branch
      %258 = sbr.rel (0) target = $region17
    $region16: #{tpu_custom_call.1} parent=1 // pred_region
      %s260 = ssub.s32 2048, 2048
      %261 = vsyncadd [#allocation3], %s260
      %s262 = sshll.u32 [#allocation2], 4
      %s263 = int_to_ptr.vmem [resolvable:$true] %s262
      %268 = dma.vmem_to_hbm [thread:$0]  %s263, 2048, %s3, [#allocation3], 128, 128, 8
    $region17: #{tpu_custom_call.1} parent=1 // pred_fallthru
      _
    // Predicated region
    $region18: #{tpu_custom_call.1} parent=1 // pred_check
      _
    $region19: #{tpu_custom_call.1} parent=1 // pred_check_branch
      %270 = sbr.rel (0) target = $region21
    $region20: #{tpu_custom_call.1} parent=1 // pred_region
      %271 = dma.done [#allocation3], 2048
    $region21: #{tpu_custom_call.1} parent=1 // pred_fallthru
      _
    %272 = vsyncpa [#allocation3], 1

</llo_original>
